<compile_context>
chip_gen: v5e
topology: v5e:2x2
jax: 0.10.0
libtpu: 0.0.40
codegen_flags: <defaults>
</compile_context>

<pallas_src>
import jax
import jax.numpy as jnp
from jax import lax
from jax.experimental import pallas as pl
from jax.experimental.pallas import tpu as pltpu

NUM_EMBEDDINGS = 1024   # nn.Embedding(1024, num_pos_feats)
NUM_POS_FEATS = 16      # default num_pos_feats


# ---------------------------------------------------------------------------
# small static helpers
# ---------------------------------------------------------------------------

def _round_up(x, m):
    return ((x + m - 1) // m) * m


def _cdiv(a, b):
    return (a + b - 1) // b


def _vmem_limit_bytes():
    """Per-generation scoped-VMEM limit: ~96 MiB on v5e/v6e (128 MiB physical),
    ~48 MiB on v7x (64 MiB physical).  Conservative default if the query fails."""
    cap = 64 * 1024 * 1024
    try:
        info = pltpu.get_tpu_info()
        cap = int(getattr(info, "vmem_capacity_bytes", cap))
    except Exception:
        pass
    return int(min(cap * 3 // 4, 96 * 1024 * 1024))


def _spec(block_shape, index_map, *, resident=False):
    """BlockSpec; constant-index (resident) inputs are single-buffered when the
    installed Pallas supports pipeline_mode -- double-buffering them only burns
    VMEM that is better spent on larger output tiles."""
    if resident and hasattr(pl, "Buffered"):
        try:
            return pl.BlockSpec(block_shape, index_map, pipeline_mode=pl.Buffered(1))
        except TypeError:
            pass
    return pl.BlockSpec(block_shape, index_map)


# ---------------------------------------------------------------------------
# kernels
# ---------------------------------------------------------------------------

def _pos_add3_kernel(row_ref, col_ref, out_ref):
    """Broadcast-add path (w >= 128).

    row_ref: (F, th, 1)   row_embed values for this row tile
    col_ref: (F, 1, tw)   col_embed values for this col tile
    out_ref: (F, th, tw)  output block

    Pure VPU work; the add is fused directly into the store expression (no
    temporaries, no reshapes, no MXU).
    """
    out_ref[...] = (row_ref[...] + col_ref[...]).astype(out_ref.dtype)


def _pos_flat_kernel(row_ref, sel_ref, col_ref, out_ref):
    """Lane-dense flat path (w < 128 only).

    row_ref: (F, th)   row tile, pre-transposed (native MXU orientation)
    sel_ref: (th, n)   one-hot lane-group selector, n = th*w (resident)
    col_ref: (F, n)    col_embed tiled to the flattened block width (resident)
    out_ref: (F, n)    lane-dense output block (flattened (h, w) -> h*w)

    The dot_general broadcasts each row value across its w lanes.  HIGHEST
    precision keeps the f32 row values exact (sel entries are 0/1 and each
    output element receives exactly one nonzero term).
    """
    row_lanes = lax.dot_general(
        row_ref[...], sel_ref[...],
        dimension_numbers=(((1,), (0,)), ((), ())),
        precision=lax.Precision.HIGHEST,
        preferred_element_type=jnp.float32,
    )
    out_ref[...] = (row_lanes + col_ref[...].astype(jnp.float32)).astype(out_ref.dtype)


# ---------------------------------------------------------------------------
# tile choosers (budget-driven; all static Python ints)
# ---------------------------------------------------------------------------

def _block_cost_3d(th, tw, f, itemsize):
    out_b = 2 * f * th * tw * itemsize                   # double-buffered output
    row_b = 2 * f * _round_up(th, 8) * 128 * itemsize    # (F, th, 1): lane-padded in VMEM
    col_b = 2 * f * 8 * _round_up(tw, 128) * itemsize    # (F, 1, tw): sublane-padded
    return out_b + row_b + col_b


def _choose_tiles_3d(h, w, f, itemsize, budget):
    """Tiles for the (F, h, w) broadcast-add path.
    th: multiple of 8 or full h; tw: multiple of 128 or full w."""
    th_cands = sorted({h} | set(range(8, min(h, 4096) + 1, 8)), reverse=True)
    tw_cands = sorted({w} | set(range(128, min(w, 8192) + 1, 128)), reverse=True)
    best = None
    for tw in tw_cands:
        for th in th_cands:
            if _block_cost_3d(th, tw, f, itemsize) <= budget:
                area = min(th, h) * min(tw, w)
                if best is None or area > best[0]:
                    best = (area, th, tw)
                break                      # descending th: first fit is the largest
    if best is None:                       # degenerate budget: minimal legal tiles
        return (8 if h >= 8 else h), (128 if w >= 128 else w)
    th, tw = best[1], best[2]
    # v7x megacore: guarantee >= 2 grid steps when the map is big enough to matter,
    # so ("parallel", "parallel") actually shards work over both TensorCores.
    if _cdiv(h, th) * _cdiv(w, tw) == 1 and f * h * w * itemsize > (1 << 20):
        if h >= 16:
            th = max(8, _round_up(_cdiv(h, 2), 8))
        elif w >= 256:
            tw = max(128, _round_up(_cdiv(w, 2), 128))
    return th, tw


def _flat_cost(th, w, f, itemsize):
    n = th * w
    sel_b = th * n * itemsize                                 # resident, single-buffered
    col_b = f * n * itemsize                                  # resident, single-buffered
    out_b = 2 * f * n * itemsize                              # double-buffered output
    row_b = 2 * _round_up(f, 8) * _round_up(th, 128) * itemsize
    return sel_b + col_b + out_b + row_b


def _choose_flat_tile(h, w, f, itemsize, budget):
    """Row tile for the flat (F, th*w) path, or None if it would bust the VMEM
    budget (caller then falls back to the 3-D broadcast-add path).
    th must be a multiple of 128 or equal h (it is the lane dim of the row input);
    keeping th <= 128 for large h bounds the quadratic sel buffer and gives >= 2
    grid steps."""
    if h <= 128:
        cands = [h]
    elif h < 256:
        cands = [h, 128]
    else:
        cands = [128]
    for th in cands:
        if _flat_cost(th, w, f, itemsize) <= budget:
            return th
    return None


# ---------------------------------------------------------------------------
# wrapper
# ---------------------------------------------------------------------------

def _broadcast_path(row_t, col_t, h, w, f, dtype, itemsize, vmem_limit, budget):
    th, tw = _choose_tiles_3d(h, w, f, itemsize, budget)
    gh, gw = _cdiv(h, th), _cdiv(w, tw)
    # Unit dims are added at the XLA level so the kernel never reshapes.
    row3 = row_t[:, :, None]                  # (F, h, 1)
    col3 = col_t[:, None, :]                  # (F, 1, w)
    return pl.pallas_call(
        _pos_add3_kernel,
        out_shape=jax.ShapeDtypeStruct((f, h, w), dtype),
        grid=(gh, gw),
        in_specs=[
            pl.BlockSpec((f, th, 1), lambda hi, wi: (0, hi, 0)),
            _spec((f, 1, tw), lambda hi, wi: (0, 0, wi), resident=(gw == 1)),
        ],
        out_specs=pl.BlockSpec((f, th, tw), lambda hi, wi: (0, hi, wi)),
        compiler_params=pltpu.CompilerParams(
            dimension_semantics=("parallel", "parallel"),
            vmem_limit_bytes=vmem_limit,
        ),
    )(row3, col3)


def _flat_path(row_t, col_t, h, w, f, dtype, th, vmem_limit):
    n = th * w
    gh = _cdiv(h, th)
    # col part of one block: lane k needs col_t[:, k % w] -> tile th copies along
    # lanes.  Resident in VMEM (constant index_map), read from HBM once.
    col_tiled = jnp.tile(col_t, (1, th))                                    # (F, n)
    # One-hot lane-group selector: sel[t, k] = (k // w == t).  0/1 is exact in any
    # float dtype (must stay float: v7x MXU has no int support).
    lane_row = jnp.repeat(jnp.arange(th, dtype=jnp.int32), w)               # (n,)
    sel = (jnp.arange(th, dtype=jnp.int32)[:, None] == lane_row[None, :]).astype(dtype)
    return pl.pallas_call(
        _pos_flat_kernel,
        out_shape=jax.ShapeDtypeStruct((f, h * w), dtype),
        grid=(gh,),
        in_specs=[
            pl.BlockSpec((f, th), lambda hi: (0, hi)),            # row tile (varies)
            _spec((th, n), lambda hi: (0, 0), resident=True),     # sel     (resident)
            _spec((f, n), lambda hi: (0, 0), resident=True),      # col     (resident)
        ],
        out_specs=pl.BlockSpec((f, n), lambda hi: (0, hi)),
        compiler_params=pltpu.CompilerParams(
            dimension_semantics=("parallel",),
            vmem_limit_bytes=vmem_limit,
        ),
    )(row_t, sel, col_tiled)


def position_embedding_learned(x, row_embed, col_embed):
    """x: (b, c, h, w) NCHW (only its shape is used). Returns (b, F, h, w)."""
    b, c, h, w = x.shape
    f = row_embed.shape[1]
    dtype = row_embed.dtype
    itemsize = jnp.dtype(dtype).itemsize

    vmem_limit = _vmem_limit_bytes()
    budget = (vmem_limit * 7) // 10           # headroom for Mosaic internal scratch

    # Embedding lookup of arange(h)/arange(w) is just a leading slice; transpose
    # the tiny (len, F) tables once at the XLA level so kernels never reorient.
    row_t = row_embed[:h].T                   # (F, h)
    col_t = col_embed[:w].T                   # (F, w)

    th_flat = _choose_flat_tile(h, w, f, itemsize, budget) if w < 128 else None
    if th_flat is not None:
        pos = _flat_path(row_t, col_t, h, w, f, dtype, th_flat, vmem_limit)
    else:
        pos = _broadcast_path(row_t, col_t, h, w, f, dtype, itemsize, vmem_limit, budget)

    # Free NCHW view + batch broadcast: no per-batch recompute or HBM writes.
    return jnp.broadcast_to(pos.reshape(1, f, h, w), (b, f, h, w))


# ---------------------------------------------------------------------------
# reference + demo
# ---------------------------------------------------------------------------

def _reference(x, row_embed, col_embed):
    b, c, h, w = x.shape
    x_emb = col_embed[:w]                               # (w, F)
    y_emb = row_embed[:h]                               # (h, F)
    pos = x_emb[None, :, :] + y_emb[:, None, :]         # (h, w, F)
    pos = jnp.transpose(pos, (2, 0, 1))[None]           # (1, F, h, w)
    return jnp.broadcast_to(pos, (b,) + pos.shape[1:])


if __name__ == "__main__":
    key = jax.random.PRNGKey(0)
    k_row, k_col, k_x = jax.random.split(key, 3)

    # Deterministic parameter init (nn.init.uniform_ -> U[0, 1)).
    row_embed = jax.random.uniform(k_row, (NUM_EMBEDDINGS, NUM_POS_FEATS), jnp.float32)
    col_embed = jax.random.uniform(k_col, (NUM_EMBEDDINGS, NUM_POS_FEATS), jnp.float32)

    # Primary example: small NCHW map (w < 128 -> lane-dense flat path).
    x = jax.random.normal(k_x, (2, 4, 16, 16), jnp.float32)
    out = jax.block_until_ready(position_embedding_learned(x, row_embed, col_embed))
    ref = _reference(x, row_embed, col_embed)
    assert out.shape == (2, NUM_POS_FEATS, 16, 16), out.shape
    assert out.dtype == jnp.float32
    assert jnp.allclose(out, ref, atol=1e-5, rtol=1e-5), "flat path mismatch vs reference"

    # Secondary check: lane-aligned broadcast-add path (w >= 128).
    x_wide = jnp.zeros((2, 4, 8, 128), jnp.float32)
    out_w = jax.block_until_ready(position_embedding_learned(x_wide, row_embed, col_embed))
    ref_w = _reference(x_wide, row_embed, col_embed)
    assert out_w.shape == (2, NUM_POS_FEATS, 8, 128), out_w.shape
    assert jnp.allclose(out_w, ref_w, atol=1e-5, rtol=1e-5), "broadcast path mismatch vs reference"

    print("KERNEL_OK")
</pallas_src>

<mosaic_0001>
module attributes {stable_mosaic.version = 11 : i64} {
  func.func @_pos_flat_kernel(%arg0: i32, %arg1: memref<16x16xf32, #tpu.memory_space<vmem>>, %arg2: memref<16x256xf32, #tpu.memory_space<vmem>>, %arg3: memref<16x256xf32, #tpu.memory_space<vmem>>, %arg4: memref<16x256xf32, #tpu.memory_space<vmem>>) attributes {dimension_semantics = [#tpu.dimension_semantics<parallel>], iteration_bounds = array<i64: 1>, scalar_prefetch = 0 : i64, scratch_operands = 0 : i64, tpu.core_type = #tpu.core_type<tc>, window_params = [{transform_indices = @transform_0, window_bounds = array<i64: 16, 16>}, {pipeline_mode = #tpu.pipeline_mode<synchronous>, transform_indices = @transform_1, window_bounds = array<i64: 16, 256>}, {pipeline_mode = #tpu.pipeline_mode<synchronous>, transform_indices = @transform_2, window_bounds = array<i64: 16, 256>}, {transform_indices = @transform_3, window_bounds = array<i64: 16, 256>}]} {
    %c0 = arith.constant 0 : index
    %c0_0 = arith.constant 0 : index
    %0 = vector.load %arg1[%c0, %c0_0] : memref<16x16xf32, #tpu.memory_space<vmem>>, vector<16x16xf32>
    %c0_1 = arith.constant 0 : index
    %c0_2 = arith.constant 0 : index
    %1 = vector.load %arg2[%c0_1, %c0_2] : memref<16x256xf32, #tpu.memory_space<vmem>>, vector<16x256xf32>
    %cst = arith.constant dense<0.000000e+00> : vector<16x256xf32>
    %2 = tpu.matmul %0, %1, %cst {dimension_numbers = #tpu.dot_dimension_numbers<[1], [0], [0], [1], [0, 0, 1, 1], [], []>, precision = #tpu.contract_precision<fp32>} : vector<16x16xf32>, vector<16x256xf32>, vector<16x256xf32> -> vector<16x256xf32>
    %c0_3 = arith.constant 0 : index
    %c0_4 = arith.constant 0 : index
    %3 = vector.load %arg3[%c0_3, %c0_4] : memref<16x256xf32, #tpu.memory_space<vmem>>, vector<16x256xf32>
    %4 = arith.addf %2, %3 : vector<16x256xf32>
    %c0_5 = arith.constant 0 : index
    %c0_6 = arith.constant 0 : index
    %5 = vector.load %arg4[%c0_5, %c0_6] : memref<16x256xf32, #tpu.memory_space<vmem>>, vector<16x256xf32>
    tpu.vector_store %arg4[%c0_5, %c0_6], %4 {strides = array<i32>} : memref<16x256xf32, #tpu.memory_space<vmem>>, vector<16x256xf32>,
    return
  }
  func.func @transform_0(%arg0: i32) -> (i32, i32) {
    %c0_i32 = arith.constant 0 : i32
    %c0_i32_0 = arith.constant 0 : i32
    return %c0_i32, %arg0 : i32, i32
  }
  func.func @transform_1(%arg0: i32) -> (i32, i32) {
    %c0_i32 = arith.constant 0 : i32
    %c0_i32_0 = arith.constant 0 : i32
    %c0_i32_1 = arith.constant 0 : i32
    return %c0_i32, %c0_i32_0 : i32, i32
  }
  func.func @transform_2(%arg0: i32) -> (i32, i32) {
    %c0_i32 = arith.constant 0 : i32
    %c0_i32_0 = arith.constant 0 : i32
    %c0_i32_1 = arith.constant 0 : i32
    return %c0_i32, %c0_i32_0 : i32, i32
  }
  func.func @transform_3(%arg0: i32) -> (i32, i32) {
    %c0_i32 = arith.constant 0 : i32
    %c0_i32_0 = arith.constant 0 : i32
    return %c0_i32, %arg0 : i32, i32
  }
}

</mosaic_0001>

<llo_original>
// kernel: tpu_custom_call.1
$region0: #{tpu_custom_call.1}
  #allocation0 [shape = 'u32[]', space=smem, size = 0x4, offset = 0x4, fixed_abs, tag = 'smem constant byte address 0x4 - core index']
  #allocation1 [shape = 'u32[72,128]{1,0:T(1,128)}', space=vmem, size = 0x9000, scoped, tag = 'internal scratch']
  %s0 = inlined_call_operand.hbm [shape: f32[16,16], index: 0, kind: input, shape index: {}]
  %s1 = inlined_call_operand.hbm [shape: f32[16,256], index: 1, kind: input, shape index: {}]
  %s2 = inlined_call_operand.hbm [shape: f32[16,256], index: 2, kind: input, shape index: {}]
  %s3 = inlined_call_operand.hbm [shape: f32[16,256], index: 3, kind: output, shape index: {}]
  %s4 = sld [smem:[#allocation0]]
  $region34: #{tpu_custom_call.1} parent=0
    _
  %s6 = ssub.s32 1, %s4
  %s7 = scalar_select 0, %s6, %s4
  $region1: #{tpu_custom_call.1} parent=0
    #allocation2 [shape = 'u8[8192]{0}', space=vmem, size = 0x2000, scoped, tag = 'input window, operand 0, single buffered']
    #allocation3 [shape = 's32[1]{0}', space=sflag, size = 0x4, scoped, tag = 'scoped memory for tpu_custom_call.1']
    #allocation4 [shape = 's32[1]{0}', space=sflag, size = 0x4, scoped, tag = 'scoped memory for tpu_custom_call.1']
    #allocation5 [shape = 'u8[16384]{0}', space=vmem, size = 0x4000, scoped, tag = 'input window, operand 1, single buffered']
    #allocation6 [shape = 's32[1]{0}', space=sflag, size = 0x4, scoped, tag = 'scoped memory for tpu_custom_call.1']
    #allocation7 [shape = 'u8[16384]{0}', space=vmem, size = 0x4000, scoped, tag = 'input window, operand 2, single buffered']
    #allocation8 [shape = 'u8[16384]{0}', space=vmem, size = 0x4000, scoped, tag = 'output window, operand 0, single buffered']
    %8 = vsyncpa [#allocation3], 0
    %9 = vsyncpa [#allocation6], 0
    %10 = vsyncpa [#allocation4], 0
    // Predicated region
    $region2: #{tpu_custom_call.1} parent=1 // pred_check
      _
    $region3: #{tpu_custom_call.1} parent=1 // pred_check_branch
      %12 = sbr.rel (0) target = $region5
    $region4: #{tpu_custom_call.1} parent=1 // pred_region
      %14 = vsyncadd [#allocation3], 0
      %s15 = sshll.u32 %s0, 4
      %s16 = int_to_ptr.hbm [resolvable:$true] %s15
      %s17 = sshll.u32 [#allocation2], 4
      %s18 = int_to_ptr.vmem [resolvable:$true] %s17
      %23 = dma.hbm_to_vmem [thread:$0]  %s16, 256, %s18, [#allocation3], 128, 128, 8
    $region5: #{tpu_custom_call.1} parent=1 // pred_fallthru
      _
    // Predicated region
    $region6: #{tpu_custom_call.1} parent=1 // pred_check
      _
    $region7: #{tpu_custom_call.1} parent=1 // pred_check_branch
      %25 = sbr.rel (0) target = $region9
    $region8: #{tpu_custom_call.1} parent=1 // pred_region
      %27 = vsyncadd [#allocation6], 0
      %s28 = sshll.u32 %s1, 4
      %s29 = int_to_ptr.hbm [resolvable:$true] %s28
      %s30 = sshll.u32 [#allocation5], 4
      %s31 = int_to_ptr.vmem [resolvable:$true] %s30
      %36 = dma.hbm_to_vmem [thread:$0]  %s29, 512, %s31, [#allocation6], 256, 256, 16
    $region9: #{tpu_custom_call.1} parent=1 // pred_fallthru
      _
    // Predicated region
    $region10: #{tpu_custom_call.1} parent=1 // pred_check
      _
    $region11: #{tpu_custom_call.1} parent=1 // pred_check_branch
      %38 = sbr.rel (0) target = $region13
    $region12: #{tpu_custom_call.1} parent=1 // pred_region
      %40 = vsyncadd [#allocation6], 0
      %s41 = sshll.u32 %s2, 4
      %s42 = int_to_ptr.hbm [resolvable:$true] %s41
      %s43 = sshll.u32 [#allocation7], 4
      %s44 = int_to_ptr.vmem [resolvable:$true] %s43
      %49 = dma.hbm_to_vmem [thread:$0]  %s42, 512, %s44, [#allocation6], 256, 256, 16
    $region13: #{tpu_custom_call.1} parent=1 // pred_fallthru
      _
    // Predicated region
    $region14: #{tpu_custom_call.1} parent=1 // pred_check
      _
    $region15: #{tpu_custom_call.1} parent=1 // pred_check_branch
      %51 = sbr.rel (0) target = $region17
    $region16: #{tpu_custom_call.1} parent=1 // pred_region
      %53 = dma.done [#allocation3], 256
    $region17: #{tpu_custom_call.1} parent=1 // pred_fallthru
      _
    // Predicated region
    $region18: #{tpu_custom_call.1} parent=1 // pred_check
      _
    $region19: #{tpu_custom_call.1} parent=1 // pred_check_branch
      %55 = sbr.rel (0) target = $region21
    $region20: #{tpu_custom_call.1} parent=1 // pred_region
      %57 = dma.done [#allocation6], 512
    $region21: #{tpu_custom_call.1} parent=1 // pred_fallthru
      _
    // Predicated region
    $region22: #{tpu_custom_call.1} parent=1 // pred_check
      _
    $region23: #{tpu_custom_call.1} parent=1 // pred_check_branch
      %59 = sbr.rel (0) target = $region25
    $region24: #{tpu_custom_call.1} parent=1 // pred_region
      %61 = dma.done [#allocation6], 512
    $region25: #{tpu_custom_call.1} parent=1 // pred_fallthru
      _
    %v62 = vld [vmem:[#allocation2] sm:$0xff]
    %v63 = vld [vmem:[#allocation2 + $0x8] sm:$0xff]
    %v64 = vld [vmem:[#allocation5] sm:$0xff]
    %v65 = vld [vmem:[#allocation5 + $0x8] sm:$0xff]
    %v66 = vld [vmem:[#allocation5 + $0x10] sm:$0xff]
    %v67 = vld [vmem:[#allocation5 + $0x18] sm:$0xff]
    %v68 = vld [vmem:[#allocation7] sm:$0xff]
    %v69 = vld [vmem:[#allocation7 + $0x8] sm:$0xff]
    %v70 = vld [vmem:[#allocation7 + $0x10] sm:$0xff]
    %v71 = vld [vmem:[#allocation7 + $0x18] sm:$0xff]
    %vm72 = vcmask 130048
    %v74 = vsel %vm72, %v62, 0
    %v77 = vsel %vm72, %v63, 0
    %79 = vmatpush.msra.mxu0 0.0
    %80 = vmatpush.msra.mxu0 0.0
    %81 = vmatpush.msra.mxu0 0.0
    %82 = vmatpush.msra.mxu0 0.0
    %83 = vmatpush.msra.mxu0 0.0
    %84 = vmatpush.msra.mxu0 0.0
    %85 = vmatpush.msra.mxu0 0.0
    %86 = vmatpush.msra.mxu0 0.0
    %87 = vmatpush.msra.mxu0 0.0
    %88 = vmatpush.msra.mxu0 0.0
    %89 = vmatpush.msra.mxu0 0.0
    %90 = vmatpush.msra.mxu0 0.0
    %91 = vmatpush.msra.mxu0 0.0
    %92 = vmatpush.msra.mxu0 0.0
    %v93 = vand.u32 %v66, 4294901760
    %94 = vmatpush.msra.mxu0 %v93
    %v95 = vand.u32 %v64, 4294901760
    %96 = vmatpush.msra.mxu0 %v95
    %v97 = vand.u32 %v74, 4294901760
    %v98 = vsub.f32 %v74, %v97
    %v99 = vand.u32 %v98, 4294901760
    %v100 = vsub.f32 %v98, %v99
    %v101 = vand.u32 %v100, 4294901760
    %102 = vmatmul.f32.gmra.mxu0 %v101
    %v103 = vpop.f32.mrf.mxu0
    %v104 = vadd.f32 %v68, %v103
    %v105 = vand.u32 %v77, 4294901760
    %v106 = vsub.f32 %v77, %v105
    %v107 = vand.u32 %v106, 4294901760
    %v108 = vsub.f32 %v106, %v107
    %v109 = vand.u32 %v108, 4294901760
    %110 = vmatmul.f32.gmra.mxu0 %v109
    %v111 = vpop.f32.mrf.mxu0
    %v112 = vadd.f32 %v70, %v111
    %113 = vdwg.mxu0
    %114 = vmatpush.msra.mxu0 0.0
    %115 = vmatpush.msra.mxu0 0.0
    %116 = vmatpush.msra.mxu0 0.0
    %117 = vmatpush.msra.mxu0 0.0
    %118 = vmatpush.msra.mxu0 0.0
    %119 = vmatpush.msra.mxu0 0.0
    %120 = vmatpush.msra.mxu0 0.0
    %121 = vmatpush.msra.mxu0 0.0
    %122 = vmatpush.msra.mxu0 0.0
    %123 = vmatpush.msra.mxu0 0.0
    %124 = vmatpush.msra.mxu0 0.0
    %125 = vmatpush.msra.mxu0 0.0
    %126 = vmatpush.msra.mxu0 0.0
    %127 = vmatpush.msra.mxu0 0.0
    %v128 = vand.u32 %v66, 4294901760
    %v129 = vsub.f32 %v66, %v128
    %v130 = vand.u32 %v129, 4294901760
    %v131 = vsub.f32 %v129, %v130
    %v132 = vand.u32 %v131, 4294901760
    %133 = vmatpush.msra.mxu0 %v132
    %v134 = vand.u32 %v64, 4294901760
    %v135 = vsub.f32 %v64, %v134
    %v136 = vand.u32 %v135, 4294901760
    %v137 = vsub.f32 %v135, %v136
    %v138 = vand.u32 %v137, 4294901760
    %139 = vmatpush.msra.mxu0 %v138
    %v140 = vand.u32 %v74, 4294901760
    %141 = vmatmul.f32.gmra.mxu0 %v140
    %v142 = vpop.f32.mrf.mxu0
    %v143 = vadd.f32 %v104, %v142
    %v144 = vand.u32 %v77, 4294901760
    %145 = vmatmul.f32.gmra.mxu0 %v144
    %v146 = vpop.f32.mrf.mxu0
    %v147 = vadd.f32 %v112, %v146
    %148 = vdwg.mxu0
    %149 = vmatpush.msra.mxu0 0.0
    %150 = vmatpush.msra.mxu0 0.0
    %151 = vmatpush.msra.mxu0 0.0
    %152 = vmatpush.msra.mxu0 0.0
    %153 = vmatpush.msra.mxu0 0.0
    %154 = vmatpush.msra.mxu0 0.0
    %155 = vmatpush.msra.mxu0 0.0
    %156 = vmatpush.msra.mxu0 0.0
    %157 = vmatpush.msra.mxu0 0.0
    %158 = vmatpush.msra.mxu0 0.0
    %159 = vmatpush.msra.mxu0 0.0
    %160 = vmatpush.msra.mxu0 0.0
    %161 = vmatpush.msra.mxu0 0.0
    %162 = vmatpush.msra.mxu0 0.0
    %v163 = vand.u32 %v66, 4294901760
    %v164 = vsub.f32 %v66, %v163
    %165 = vmatpush.msra.mxu0 %v164
    %v166 = vand.u32 %v64, 4294901760
    %v167 = vsub.f32 %v64, %v166
    %168 = vmatpush.msra.mxu0 %v167
    %v169 = vand.u32 %v74, 4294901760
    %v170 = vsub.f32 %v74, %v169
    %171 = vmatmul.f32.gmra.mxu0 %v170
    %v172 = vpop.f32.mrf.mxu0
    %v173 = vadd.f32 %v143, %v172
    %v174 = vand.u32 %v77, 4294901760
    %v175 = vsub.f32 %v77, %v174
    %176 = vmatmul.f32.gmra.mxu0 %v175
    %v177 = vpop.f32.mrf.mxu0
    %v178 = vadd.f32 %v147, %v177
    %179 = vdwg.mxu0
    %180 = vmatpush.msra.mxu0 0.0
    %181 = vmatpush.msra.mxu0 0.0
    %182 = vmatpush.msra.mxu0 0.0
    %183 = vmatpush.msra.mxu0 0.0
    %184 = vmatpush.msra.mxu0 0.0
    %185 = vmatpush.msra.mxu0 0.0
    %186 = vmatpush.msra.mxu0 0.0
    %187 = vmatpush.msra.mxu0 0.0
    %188 = vmatpush.msra.mxu0 0.0
    %189 = vmatpush.msra.mxu0 0.0
    %190 = vmatpush.msra.mxu0 0.0
    %191 = vmatpush.msra.mxu0 0.0
    %192 = vmatpush.msra.mxu0 0.0
    %193 = vmatpush.msra.mxu0 0.0
    %v194 = vand.u32 %v66, 4294901760
    %195 = vmatpush.msra.mxu0 %v194
    %v196 = vand.u32 %v64, 4294901760
    %197 = vmatpush.msra.mxu0 %v196
    %v198 = vand.u32 %v74, 4294901760
    %v199 = vsub.f32 %v74, %v198
    %v200 = vand.u32 %v199, 4294901760
    %201 = vmatmul.f32.gmra.mxu0 %v200
    %v202 = vpop.f32.mrf.mxu0
    %v203 = vadd.f32 %v173, %v202
    %v204 = vand.u32 %v77, 4294901760
    %v205 = vsub.f32 %v77, %v204
    %v206 = vand.u32 %v205, 4294901760
    %207 = vmatmul.f32.gmra.mxu0 %v206
    %v208 = vpop.f32.mrf.mxu0
    %v209 = vadd.f32 %v178, %v208
    %210 = vdwg.mxu0
    %211 = vmatpush.msra.mxu0 0.0
    %212 = vmatpush.msra.mxu0 0.0
    %213 = vmatpush.msra.mxu0 0.0
    %214 = vmatpush.msra.mxu0 0.0
    %215 = vmatpush.msra.mxu0 0.0
    %216 = vmatpush.msra.mxu0 0.0
    %217 = vmatpush.msra.mxu0 0.0
    %218 = vmatpush.msra.mxu0 0.0
    %219 = vmatpush.msra.mxu0 0.0
    %220 = vmatpush.msra.mxu0 0.0
    %221 = vmatpush.msra.mxu0 0.0
    %222 = vmatpush.msra.mxu0 0.0
    %223 = vmatpush.msra.mxu0 0.0
    %224 = vmatpush.msra.mxu0 0.0
    %v225 = vand.u32 %v66, 4294901760
    %v226 = vsub.f32 %v66, %v225
    %v227 = vand.u32 %v226, 4294901760
    %228 = vmatpush.msra.mxu0 %v227
    %v229 = vand.u32 %v64, 4294901760
    %v230 = vsub.f32 %v64, %v229
    %v231 = vand.u32 %v230, 4294901760
    %232 = vmatpush.msra.mxu0 %v231
    %v233 = vand.u32 %v74, 4294901760
    %234 = vmatmul.f32.gmra.mxu0 %v233
    %v235 = vpop.f32.mrf.mxu0
    %v236 = vadd.f32 %v203, %v235
    %v237 = vand.u32 %v77, 4294901760
    %238 = vmatmul.f32.gmra.mxu0 %v237
    %v239 = vpop.f32.mrf.mxu0
    %v240 = vadd.f32 %v209, %v239
    %241 = vdwg.mxu0
    %242 = vmatpush.msra.mxu0 0.0
    %243 = vmatpush.msra.mxu0 0.0
    %244 = vmatpush.msra.mxu0 0.0
    %245 = vmatpush.msra.mxu0 0.0
    %246 = vmatpush.msra.mxu0 0.0
    %247 = vmatpush.msra.mxu0 0.0
    %248 = vmatpush.msra.mxu0 0.0
    %249 = vmatpush.msra.mxu0 0.0
    %250 = vmatpush.msra.mxu0 0.0
    %251 = vmatpush.msra.mxu0 0.0
    %252 = vmatpush.msra.mxu0 0.0
    %253 = vmatpush.msra.mxu0 0.0
    %254 = vmatpush.msra.mxu0 0.0
    %255 = vmatpush.msra.mxu0 0.0
    %v256 = vand.u32 %v66, 4294901760
    %257 = vmatpush.msra.mxu0 %v256
    %v258 = vand.u32 %v64, 4294901760
    %259 = vmatpush.msra.mxu0 %v258
    %v260 = vand.u32 %v74, 4294901760
    %261 = vmatmul.f32.gmra.mxu0 %v260
    %v262 = vpop.f32.mrf.mxu0
    %v263 = vadd.f32 %v236, %v262
    %v264 = vand.u32 %v77, 4294901760
    %265 = vmatmul.f32.gmra.mxu0 %v264
    %v266 = vpop.f32.mrf.mxu0
    %v267 = vadd.f32 %v240, %v266
    %268 = vdwg.mxu0
    %269 = vmatpush.msra.mxu0 0.0
    %270 = vmatpush.msra.mxu0 0.0
    %271 = vmatpush.msra.mxu0 0.0
    %272 = vmatpush.msra.mxu0 0.0
    %273 = vmatpush.msra.mxu0 0.0
    %274 = vmatpush.msra.mxu0 0.0
    %275 = vmatpush.msra.mxu0 0.0
    %276 = vmatpush.msra.mxu0 0.0
    %277 = vmatpush.msra.mxu0 0.0
    %278 = vmatpush.msra.mxu0 0.0
    %279 = vmatpush.msra.mxu0 0.0
    %280 = vmatpush.msra.mxu0 0.0
    %281 = vmatpush.msra.mxu0 0.0
    %282 = vmatpush.msra.mxu0 0.0
    %v283 = vand.u32 %v67, 4294901760
    %284 = vmatpush.msra.mxu0 %v283
    %v285 = vand.u32 %v65, 4294901760
    %286 = vmatpush.msra.mxu0 %v285
    %v287 = vand.u32 %v74, 4294901760
    %v288 = vsub.f32 %v74, %v287
    %v289 = vand.u32 %v288, 4294901760
    %v290 = vsub.f32 %v288, %v289
    %v291 = vand.u32 %v290, 4294901760
    %292 = vmatmul.f32.gmra.mxu0 %v291
    %v293 = vpop.f32.mrf.mxu0
    %v294 = vadd.f32 %v69, %v293
    %v295 = vand.u32 %v77, 4294901760
    %v296 = vsub.f32 %v77, %v295
    %v297 = vand.u32 %v296, 4294901760
    %v298 = vsub.f32 %v296, %v297
    %v299 = vand.u32 %v298, 4294901760
    %300 = vmatmul.f32.gmra.mxu0 %v299
    %v301 = vpop.f32.mrf.mxu0
    %v302 = vadd.f32 %v71, %v301
    %303 = vdwg.mxu0
    %304 = vmatpush.msra.mxu0 0.0
    %305 = vmatpush.msra.mxu0 0.0
    %306 = vmatpush.msra.mxu0 0.0
    %307 = vmatpush.msra.mxu0 0.0
    %308 = vmatpush.msra.mxu0 0.0
    %309 = vmatpush.msra.mxu0 0.0
    %310 = vmatpush.msra.mxu0 0.0
    %311 = vmatpush.msra.mxu0 0.0
    %312 = vmatpush.msra.mxu0 0.0
    %313 = vmatpush.msra.mxu0 0.0
    %314 = vmatpush.msra.mxu0 0.0
    %315 = vmatpush.msra.mxu0 0.0
    %316 = vmatpush.msra.mxu0 0.0
    %317 = vmatpush.msra.mxu0 0.0
    %v318 = vand.u32 %v67, 4294901760
    %v319 = vsub.f32 %v67, %v318
    %v320 = vand.u32 %v319, 4294901760
    %v321 = vsub.f32 %v319, %v320
    %v322 = vand.u32 %v321, 4294901760
    %323 = vmatpush.msra.mxu0 %v322
    %v324 = vand.u32 %v65, 4294901760
    %v325 = vsub.f32 %v65, %v324
    %v326 = vand.u32 %v325, 4294901760
    %v327 = vsub.f32 %v325, %v326
    %v328 = vand.u32 %v327, 4294901760
    %329 = vmatpush.msra.mxu0 %v328
    %v330 = vand.u32 %v74, 4294901760
    %331 = vmatmul.f32.gmra.mxu0 %v330
    %v332 = vpop.f32.mrf.mxu0
    %v333 = vadd.f32 %v294, %v332
    %v334 = vand.u32 %v77, 4294901760
    %335 = vmatmul.f32.gmra.mxu0 %v334
    %v336 = vpop.f32.mrf.mxu0
    %v337 = vadd.f32 %v302, %v336
    %338 = vdwg.mxu0
    %339 = vmatpush.msra.mxu0 0.0
    %340 = vmatpush.msra.mxu0 0.0
    %341 = vmatpush.msra.mxu0 0.0
    %342 = vmatpush.msra.mxu0 0.0
    %343 = vmatpush.msra.mxu0 0.0
    %344 = vmatpush.msra.mxu0 0.0
    %345 = vmatpush.msra.mxu0 0.0
    %346 = vmatpush.msra.mxu0 0.0
    %347 = vmatpush.msra.mxu0 0.0
    %348 = vmatpush.msra.mxu0 0.0
    %349 = vmatpush.msra.mxu0 0.0
    %350 = vmatpush.msra.mxu0 0.0
    %351 = vmatpush.msra.mxu0 0.0
    %352 = vmatpush.msra.mxu0 0.0
    %v353 = vand.u32 %v67, 4294901760
    %v354 = vsub.f32 %v67, %v353
    %355 = vmatpush.msra.mxu0 %v354
    %v356 = vand.u32 %v65, 4294901760
    %v357 = vsub.f32 %v65, %v356
    %358 = vmatpush.msra.mxu0 %v357
    %v359 = vand.u32 %v74, 4294901760
    %v360 = vsub.f32 %v74, %v359
    %361 = vmatmul.f32.gmra.mxu0 %v360
    %v362 = vpop.f32.mrf.mxu0
    %v363 = vadd.f32 %v333, %v362
    %v364 = vand.u32 %v77, 4294901760
    %v365 = vsub.f32 %v77, %v364
    %366 = vmatmul.f32.gmra.mxu0 %v365
    %v367 = vpop.f32.mrf.mxu0
    %v368 = vadd.f32 %v337, %v367
    %369 = vdwg.mxu0
    %370 = vmatpush.msra.mxu0 0.0
    %371 = vmatpush.msra.mxu0 0.0
    %372 = vmatpush.msra.mxu0 0.0
    %373 = vmatpush.msra.mxu0 0.0
    %374 = vmatpush.msra.mxu0 0.0
    %375 = vmatpush.msra.mxu0 0.0
    %376 = vmatpush.msra.mxu0 0.0
    %377 = vmatpush.msra.mxu0 0.0
    %378 = vmatpush.msra.mxu0 0.0
    %379 = vmatpush.msra.mxu0 0.0
    %380 = vmatpush.msra.mxu0 0.0
    %381 = vmatpush.msra.mxu0 0.0
    %382 = vmatpush.msra.mxu0 0.0
    %383 = vmatpush.msra.mxu0 0.0
    %v384 = vand.u32 %v67, 4294901760
    %385 = vmatpush.msra.mxu0 %v384
    %v386 = vand.u32 %v65, 4294901760
    %387 = vmatpush.msra.mxu0 %v386
    %v388 = vand.u32 %v74, 4294901760
    %v389 = vsub.f32 %v74, %v388
    %v390 = vand.u32 %v389, 4294901760
    %391 = vmatmul.f32.gmra.mxu0 %v390
    %v392 = vpop.f32.mrf.mxu0
    %v393 = vadd.f32 %v363, %v392
    %v394 = vand.u32 %v77, 4294901760
    %v395 = vsub.f32 %v77, %v394
    %v396 = vand.u32 %v395, 4294901760
    %397 = vmatmul.f32.gmra.mxu0 %v396
    %v398 = vpop.f32.mrf.mxu0
    %v399 = vadd.f32 %v368, %v398
    %400 = vdwg.mxu0
    %401 = vmatpush.msra.mxu0 0.0
    %402 = vmatpush.msra.mxu0 0.0
    %403 = vmatpush.msra.mxu0 0.0
    %404 = vmatpush.msra.mxu0 0.0
    %405 = vmatpush.msra.mxu0 0.0
    %406 = vmatpush.msra.mxu0 0.0
    %407 = vmatpush.msra.mxu0 0.0
    %408 = vmatpush.msra.mxu0 0.0
    %409 = vmatpush.msra.mxu0 0.0
    %410 = vmatpush.msra.mxu0 0.0
    %411 = vmatpush.msra.mxu0 0.0
    %412 = vmatpush.msra.mxu0 0.0
    %413 = vmatpush.msra.mxu0 0.0
    %414 = vmatpush.msra.mxu0 0.0
    %v415 = vand.u32 %v67, 4294901760
    %v416 = vsub.f32 %v67, %v415
    %v417 = vand.u32 %v416, 4294901760
    %418 = vmatpush.msra.mxu0 %v417
    %v419 = vand.u32 %v65, 4294901760
    %v420 = vsub.f32 %v65, %v419
    %v421 = vand.u32 %v420, 4294901760
    %422 = vmatpush.msra.mxu0 %v421
    %v423 = vand.u32 %v74, 4294901760
    %424 = vmatmul.f32.gmra.mxu0 %v423
    %v425 = vpop.f32.mrf.mxu0
    %v426 = vadd.f32 %v393, %v425
    %v427 = vand.u32 %v77, 4294901760
    %428 = vmatmul.f32.gmra.mxu0 %v427
    %v429 = vpop.f32.mrf.mxu0
    %v430 = vadd.f32 %v399, %v429
    %431 = vdwg.mxu0
    %432 = vmatpush.msra.mxu0 0.0
    %433 = vmatpush.msra.mxu0 0.0
    %434 = vmatpush.msra.mxu0 0.0
    %435 = vmatpush.msra.mxu0 0.0
    %436 = vmatpush.msra.mxu0 0.0
    %437 = vmatpush.msra.mxu0 0.0
    %438 = vmatpush.msra.mxu0 0.0
    %439 = vmatpush.msra.mxu0 0.0
    %440 = vmatpush.msra.mxu0 0.0
    %441 = vmatpush.msra.mxu0 0.0
    %442 = vmatpush.msra.mxu0 0.0
    %443 = vmatpush.msra.mxu0 0.0
    %444 = vmatpush.msra.mxu0 0.0
    %445 = vmatpush.msra.mxu0 0.0
    %v446 = vand.u32 %v67, 4294901760
    %447 = vmatpush.msra.mxu0 %v446
    %v448 = vand.u32 %v65, 4294901760
    %449 = vmatpush.msra.mxu0 %v448
    %v450 = vand.u32 %v74, 4294901760
    %451 = vmatmul.f32.gmra.mxu0 %v450
    %v452 = vpop.f32.mrf.mxu0
    %v453 = vadd.f32 %v426, %v452
    %v454 = vand.u32 %v77, 4294901760
    %455 = vmatmul.f32.gmra.mxu0 %v454
    %v456 = vpop.f32.mrf.mxu0
    %v457 = vadd.f32 %v430, %v456
    %458 = vdwg.mxu0
    %459 = vst [vmem:[#allocation8] sm:$0xff] %v263
    %460 = vst [vmem:[#allocation8 + $0x8] sm:$0xff] %v453
    %461 = vst [vmem:[#allocation8 + $0x10] sm:$0xff] %v267
    %462 = vst [vmem:[#allocation8 + $0x18] sm:$0xff] %v457
    // Predicated region
    $region26: #{tpu_custom_call.1} parent=1 // pred_check
      _
    $region27: #{tpu_custom_call.1} parent=1 // pred_check_branch
      %464 = sbr.rel (0) target = $region29
    $region28: #{tpu_custom_call.1} parent=1 // pred_region
      %466 = vsyncadd [#allocation4], 0
      %s467 = sshll.u32 [#allocation8], 4
      %s468 = int_to_ptr.vmem [resolvable:$true] %s467
      %s469 = sshll.u32 %s3, 4
      %s470 = int_to_ptr.hbm [resolvable:$true] %s469
      %475 = dma.vmem_to_hbm [thread:$0]  %s468, 512, %s470, [#allocation4], 256, 256, 16
    $region29: #{tpu_custom_call.1} parent=1 // pred_fallthru
      _
    // Predicated region
    $region30: #{tpu_custom_call.1} parent=1 // pred_check
      _
    $region31: #{tpu_custom_call.1} parent=1 // pred_check_branch
      %477 = sbr.rel (0) target = $region33
    $region32: #{tpu_custom_call.1} parent=1 // pred_region
      %479 = dma.done [#allocation4], 512
    $region33: #{tpu_custom_call.1} parent=1 // pred_fallthru
      _
    %480 = vsyncpa [#allocation3], 1
    %481 = vsyncpa [#allocation6], 1
    %482 = vsyncpa [#allocation4], 1

</llo_original>
